<compile_context>
chip_gen: v7x
topology: tpu7x:2x2x1
jax: 0.10.0
libtpu: 0.0.40
codegen_flags: <defaults>
</compile_context>

<pallas_src>
import jax
import jax.numpy as jnp
from jax.experimental import pallas as pl
from jax.experimental.pallas import tpu as pltpu


def _round_up(x, m):
    return (x + m - 1) // m * m


def _mlp_kernel(x_ref, w1_ref, w2_ref, aux_ref, o_ref):
    # x_ref:   (3, TB)   f32   (x transposed: features on sublanes, batch on lanes)
    # w1_ref:  (64, 3)   f32   (fc1 weight, PyTorch [out, in] layout)
    # w2_ref:  (64, 64)  bf16  (fc2 weight, PyTorch [out, in] layout)
    # aux_ref: (64, 4)   f32   cols = [b1, b2, fc3_w^T, (b3 at row 0)]
    # o_ref:   (1, TB)   f32   (lane-dense output row)
    xT = x_ref[...]                       # (3, TB) f32
    w1 = w1_ref[...]                      # (64, 3)

    b1 = aux_ref[:, 0:1]                  # (64, 1)
    b2 = aux_ref[:, 1:2]                  # (64, 1)
    w3c = aux_ref[:, 2:3]                 # (64, 1)  fc3 weight as a column
    b3 = aux_ref[0:1, 3:4]                # (1, 1)

    # ---- layer 1 (3 -> 64): K=3 is too small for the MXU; run on the VPU as
    # three broadcast multiply-adds (f32 elementwise; v5e VPU has no bf16).
    h1 = (w1[:, 0:1] * xT[0:1, :]
          + w1[:, 1:2] * xT[1:2, :]
          + w1[:, 2:3] * xT[2:3, :]
          + b1)                           # (64, TB)
    h1 = jnp.maximum(h1, 0.0)

    # ---- layer 2 (64 -> 64): the only real matmul. bf16 inputs, f32 accum.
    # Shaped (64,64)@(64,TB) so the big batch dim fills the MXU output lanes.
    h2 = jnp.dot(w2_ref[...], h1.astype(jnp.bfloat16),
                 preferred_element_type=jnp.float32) + b2
    h2 = jnp.maximum(h2, 0.0)             # (64, TB)

    # ---- layer 3 (64 -> 1): N=1 would waste 255/256 MXU columns; use a VPU
    # multiply + XLU cross-sublane reduction instead. Result stays lane-dense.
    out = jnp.sum(h2 * w3c, axis=0, keepdims=True) + b3   # (1, TB)
    o_ref[...] = out.astype(o_ref.dtype)


def car_price_model_forward(x, params, *, block_batch=4096):
    """x: [B, 3] float32. params: dict of fc{1,2,3} weights/biases (PyTorch layout)."""
    B = x.shape[0]

    # Lane-friendly batch tile: multiple of 128, capped at block_batch.
    TB = min(_round_up(block_batch, 128), _round_up(B, 128))
    G = pl.cdiv(B, TB)
    B_pad = G * TB

    # Feature-major layout so batch lands on the 128-lane axis (lane-dense
    # loads/stores in the kernel).  This transpose/pad is a cheap one-shot
    # XLA copy of the (tiny-feature) input.
    xT = jnp.pad(x.astype(jnp.float32).T, ((0, 0), (0, B_pad - B)))   # (3, B_pad)

    # Weights kept in PyTorch [out, in] layout (that's exactly what the
    # transposed formulation wants); fc2 in bf16 for the MXU fast path.
    w1 = params["fc1_w"].astype(jnp.float32)             # (64, 3)
    w2 = params["fc2_w"].astype(jnp.bfloat16)            # (64, 64)

    # Pack small f32 operands (b1, b2, fc3 weight column, b3) into one (64, 4).
    aux = jnp.zeros((64, 4), jnp.float32)
    aux = aux.at[:, 0].set(params["fc1_b"].astype(jnp.float32))
    aux = aux.at[:, 1].set(params["fc2_b"].astype(jnp.float32))
    aux = aux.at[:, 2].set(params["fc3_w"][0].astype(jnp.float32))
    aux = aux.at[0, 3].set(params["fc3_b"][0].astype(jnp.float32))

    flops = B_pad * (2 * 3 * 64 + 2 * 64 * 64 + 2 * 64)
    bytes_accessed = (B_pad * 3 * 4 + B_pad * 4
                      + 64 * 3 * 4 + 64 * 64 * 2 + 64 * 4 * 4)

    out = pl.pallas_call(
        _mlp_kernel,
        out_shape=jax.ShapeDtypeStruct((1, B_pad), jnp.float32),
        grid=(G,),
        in_specs=[
            pl.BlockSpec((3, TB), lambda i: (0, i)),     # x^T: tiled over batch
            pl.BlockSpec((64, 3), lambda i: (0, 0)),     # w1: VMEM-resident
            pl.BlockSpec((64, 64), lambda i: (0, 0)),    # w2: VMEM-resident
            pl.BlockSpec((64, 4), lambda i: (0, 0)),     # aux: VMEM-resident
        ],
        out_specs=pl.BlockSpec((1, TB), lambda i: (0, i)),
        compiler_params=pltpu.CompilerParams(
            dimension_semantics=("parallel",)),          # megacore on v7x
        cost_estimate=pl.CostEstimate(
            flops=flops, transcendentals=0, bytes_accessed=bytes_accessed),
    )(xT, w1, w2, aux)

    # (1, B_pad) -> (B, 1)
    return out.reshape(B_pad)[:B][:, None]


def init_params(key):
    """Deterministic init matching nn.Linear shapes (PyTorch layout: [out, in])."""
    ks = jax.random.split(key, 6)

    def uinit(k, shape, fan_in):
        bound = 1.0 / jnp.sqrt(fan_in)
        return jax.random.uniform(k, shape, jnp.float32, -bound, bound)

    return {
        "fc1_w": uinit(ks[0], (64, 3), 3),
        "fc1_b": uinit(ks[1], (64,), 3),
        "fc2_w": uinit(ks[2], (64, 64), 64),
        "fc2_b": uinit(ks[3], (64,), 64),
        "fc3_w": uinit(ks[4], (1, 64), 64),
        "fc3_b": uinit(ks[5], (1,), 64),
    }


def _reference(x, p):
    h1 = jnp.maximum(x @ p["fc1_w"].T + p["fc1_b"], 0.0)
    h2 = jnp.maximum(h1 @ p["fc2_w"].T + p["fc2_b"], 0.0)
    return h2 @ p["fc3_w"].T + p["fc3_b"]


if __name__ == "__main__":
    key = jax.random.PRNGKey(0)
    k_params, k_x, k_x2 = jax.random.split(key, 3)
    params = init_params(k_params)

    # Small case (single tile, padded batch).
    batch = 8
    x = jax.random.normal(k_x, (batch, 3), jnp.float32)
    out = jax.block_until_ready(car_price_model_forward(x, params))
    ref = _reference(x, params)
    assert out.shape == (batch, 1), out.shape
    # bf16 fc2 weights -> loosened tolerance for the regression output.
    assert jnp.allclose(out, ref, atol=5e-2, rtol=5e-2), (out, ref)

    # Multi-tile case to exercise the batch grid + padding path.
    batch2 = 700
    x2 = jax.random.normal(k_x2, (batch2, 3), jnp.float32)
    out2 = jax.block_until_ready(
        car_price_model_forward(x2, params, block_batch=256))
    ref2 = _reference(x2, params)
    assert out2.shape == (batch2, 1), out2.shape
    assert jnp.allclose(out2, ref2, atol=5e-2, rtol=5e-2)

    print("KERNEL_OK")
</pallas_src>

<mosaic_0001>
module attributes {stable_mosaic.version = 11 : i64} {
  func.func @_mlp_kernel(%arg0: i32, %arg1: memref<3x128xf32, #tpu.memory_space<vmem>>, %arg2: memref<64x3xf32, #tpu.memory_space<vmem>>, %arg3: memref<64x64xbf16, #tpu.memory_space<vmem>>, %arg4: memref<64x4xf32, #tpu.memory_space<vmem>>, %arg5: memref<1x128xf32, #tpu.memory_space<vmem>>) attributes {dimension_semantics = [#tpu.dimension_semantics<parallel>], iteration_bounds = array<i64: 1>, scalar_prefetch = 0 : i64, scratch_operands = 0 : i64, tpu.core_type = #tpu.core_type<tc>, window_params = [{transform_indices = @transform_0, window_bounds = array<i64: 3, 128>}, {pipeline_mode = #tpu.pipeline_mode<synchronous>, transform_indices = @transform_1, window_bounds = array<i64: 64, 3>}, {pipeline_mode = #tpu.pipeline_mode<synchronous>, transform_indices = @transform_2, window_bounds = array<i64: 64, 64>}, {pipeline_mode = #tpu.pipeline_mode<synchronous>, transform_indices = @transform_3, window_bounds = array<i64: 64, 4>}, {transform_indices = @transform_4, window_bounds = array<i64: 1, 128>}]} {
    %c0 = arith.constant 0 : index
    %c0_0 = arith.constant 0 : index
    %0 = vector.load %arg1[%c0, %c0_0] : memref<3x128xf32, #tpu.memory_space<vmem>>, vector<3x128xf32>
    %c0_1 = arith.constant 0 : index
    %c0_2 = arith.constant 0 : index
    %1 = vector.load %arg2[%c0_1, %c0_2] : memref<64x3xf32, #tpu.memory_space<vmem>>, vector<64x3xf32>
    %c0_3 = arith.constant 0 : index
    %c0_4 = arith.constant 0 : index
    %2 = vector.load %arg4[%c0_3, %c0_4] : memref<64x4xf32, #tpu.memory_space<vmem>>, vector<64x1xf32>
    %c0_5 = arith.constant 0 : index
    %c1 = arith.constant 1 : index
    %3 = vector.load %arg4[%c0_5, %c1] : memref<64x4xf32, #tpu.memory_space<vmem>>, vector<64x1xf32>
    %c0_6 = arith.constant 0 : index
    %c2 = arith.constant 2 : index
    %4 = vector.load %arg4[%c0_6, %c2] : memref<64x4xf32, #tpu.memory_space<vmem>>, vector<64x1xf32>
    %c0_7 = arith.constant 0 : index
    %c3 = arith.constant 3 : index
    %5 = vector.load %arg4[%c0_7, %c3] : memref<64x4xf32, #tpu.memory_space<vmem>>, vector<1x1xf32>
    %6 = vector.extract_strided_slice %1 {offsets = [0, 0], sizes = [64, 1], strides = [1, 1]} : vector<64x3xf32> to vector<64x1xf32>
    %7 = vector.extract_strided_slice %0 {offsets = [0, 0], sizes = [1, 128], strides = [1, 1]} : vector<3x128xf32> to vector<1x128xf32>
    %8 = vector.broadcast %6 : vector<64x1xf32> to vector<64x128xf32>
    %9 = vector.broadcast %7 : vector<1x128xf32> to vector<64x128xf32>
    %10 = arith.mulf %8, %9 : vector<64x128xf32>
    %11 = vector.extract_strided_slice %1 {offsets = [0, 1], sizes = [64, 1], strides = [1, 1]} : vector<64x3xf32> to vector<64x1xf32>
    %12 = vector.extract_strided_slice %0 {offsets = [1, 0], sizes = [1, 128], strides = [1, 1]} : vector<3x128xf32> to vector<1x128xf32>
    %13 = vector.broadcast %11 : vector<64x1xf32> to vector<64x128xf32>
    %14 = vector.broadcast %12 : vector<1x128xf32> to vector<64x128xf32>
    %15 = arith.mulf %13, %14 : vector<64x128xf32>
    %16 = arith.addf %10, %15 : vector<64x128xf32>
    %17 = vector.extract_strided_slice %1 {offsets = [0, 2], sizes = [64, 1], strides = [1, 1]} : vector<64x3xf32> to vector<64x1xf32>
    %18 = vector.extract_strided_slice %0 {offsets = [2, 0], sizes = [1, 128], strides = [1, 1]} : vector<3x128xf32> to vector<1x128xf32>
    %19 = vector.broadcast %17 : vector<64x1xf32> to vector<64x128xf32>
    %20 = vector.broadcast %18 : vector<1x128xf32> to vector<64x128xf32>
    %21 = arith.mulf %19, %20 : vector<64x128xf32>
    %22 = arith.addf %16, %21 : vector<64x128xf32>
    %23 = vector.broadcast %2 : vector<64x1xf32> to vector<64x128xf32>
    %24 = arith.addf %22, %23 : vector<64x128xf32>
    %cst = arith.constant 0.000000e+00 : f32
    %25 = vector.broadcast %cst : f32 to vector<64x128xf32>
    %26 = arith.maximumf %24, %25 : vector<64x128xf32>
    %c0_8 = arith.constant 0 : index
    %c0_9 = arith.constant 0 : index
    %27 = vector.load %arg3[%c0_8, %c0_9] : memref<64x64xbf16, #tpu.memory_space<vmem>>, vector<64x64xbf16>
    %28 = arith.truncf %26 : vector<64x128xf32> to vector<64x128xbf16>
    %cst_10 = arith.constant dense<0.000000e+00> : vector<64x128xf32>
    %29 = tpu.matmul %27, %28, %cst_10 {dimension_numbers = #tpu.dot_dimension_numbers<[1], [0], [0], [1], [0, 0, 1, 1], [], []>} : vector<64x64xbf16>, vector<64x128xbf16>, vector<64x128xf32> -> vector<64x128xf32>
    %30 = vector.broadcast %3 : vector<64x1xf32> to vector<64x128xf32>
    %31 = arith.addf %29, %30 : vector<64x128xf32>
    %cst_11 = arith.constant 0.000000e+00 : f32
    %32 = vector.broadcast %cst_11 : f32 to vector<64x128xf32>
    %33 = arith.maximumf %31, %32 : vector<64x128xf32>
    %34 = vector.broadcast %4 : vector<64x1xf32> to vector<64x128xf32>
    %35 = arith.mulf %33, %34 : vector<64x128xf32>
    %cst_12 = arith.constant dense<0.000000e+00> : vector<128xf32>
    %36 = vector.multi_reduction <add>, %35, %cst_12 [0] : vector<64x128xf32> to vector<128xf32>
    %37 = vector.shape_cast %36 : vector<128xf32> to vector<1x128xf32>
    %38 = vector.broadcast %5 : vector<1x1xf32> to vector<1x128xf32>
    %39 = arith.addf %37, %38 : vector<1x128xf32>
    %c0_13 = arith.constant 0 : index
    %c0_14 = arith.constant 0 : index
    %40 = vector.load %arg5[%c0_13, %c0_14] : memref<1x128xf32, #tpu.memory_space<vmem>>, vector<1x128xf32>
    tpu.vector_store %arg5[%c0_13, %c0_14], %39 {strides = array<i32>} : memref<1x128xf32, #tpu.memory_space<vmem>>, vector<1x128xf32>,
    return
  }
  func.func @transform_0(%arg0: i32) -> (i32, i32) {
    %c0_i32 = arith.constant 0 : i32
    %c0_i32_0 = arith.constant 0 : i32
    return %c0_i32, %arg0 : i32, i32
  }
  func.func @transform_1(%arg0: i32) -> (i32, i32) {
    %c0_i32 = arith.constant 0 : i32
    %c0_i32_0 = arith.constant 0 : i32
    %c0_i32_1 = arith.constant 0 : i32
    return %c0_i32, %c0_i32_0 : i32, i32
  }
  func.func @transform_2(%arg0: i32) -> (i32, i32) {
    %c0_i32 = arith.constant 0 : i32
    %c0_i32_0 = arith.constant 0 : i32
    %c0_i32_1 = arith.constant 0 : i32
    return %c0_i32, %c0_i32_0 : i32, i32
  }
  func.func @transform_3(%arg0: i32) -> (i32, i32) {
    %c0_i32 = arith.constant 0 : i32
    %c0_i32_0 = arith.constant 0 : i32
    %c0_i32_1 = arith.constant 0 : i32
    return %c0_i32, %c0_i32_0 : i32, i32
  }
  func.func @transform_4(%arg0: i32) -> (i32, i32) {
    %c0_i32 = arith.constant 0 : i32
    %c0_i32_0 = arith.constant 0 : i32
    return %c0_i32, %arg0 : i32, i32
  }
}

</mosaic_0001>

<llo_original>
// kernel: tpu_custom_call.1
$region0: #{tpu_custom_call.1}
  #allocation0 [shape = 'u32[]', space=smem, size = 0x4, offset = 0x4, fixed_abs, tag = 'smem constant byte address 0x4 - core index']
  #allocation1 [shape = 'u32[144,128]{1,0:T(1,128)}', space=vmem, size = 0x12000, scoped, tag = 'internal scratch']
  %s0 = inlined_call_operand.vmem [shape: f32[3,128], index: 0, kind: input, shape index: {}]
  %s1 = inlined_call_operand.vmem [shape: f32[64,3], index: 1, kind: input, shape index: {}]
  %s2 = inlined_call_operand.vmem [shape: bf16[64,64], index: 2, kind: input, shape index: {}]
  %s3 = inlined_call_operand.vmem [shape: f32[64,4], index: 3, kind: input, shape index: {}]
  %s4 = inlined_call_operand.hbm [shape: f32[1,128], index: 4, kind: output, shape index: {}]
  %s5 = sld [smem:[#allocation0]]
  $region26: #{tpu_custom_call.1} parent=0
    _
  %s7 = ssub.s32 1, %s5
  %s8 = scalar_select 0, %s7, %s5
  $region1: #{tpu_custom_call.1} parent=0
    #allocation2 [shape = 'u8[512]{0}', space=vmem, size = 0x400, scoped, tag = 'output window, operand 0, single buffered']
    #allocation3 [shape = 's32[1]{0}', space=sflag, size = 0x4, scoped, tag = 'scoped memory for tpu_custom_call.1']
    %9 = vsyncpa [#allocation3], 0
    // Predicated region
    $region2: #{tpu_custom_call.1} parent=1 // pred_check
      _
    $region3: #{tpu_custom_call.1} parent=1 // pred_check_branch
      %11 = sbr.rel (0) target = $region5
    $region4: #{tpu_custom_call.1} parent=1 // pred_region
      _
    $region5: #{tpu_custom_call.1} parent=1 // pred_fallthru
      _
    // Predicated region
    $region6: #{tpu_custom_call.1} parent=1 // pred_check
      _
    $region7: #{tpu_custom_call.1} parent=1 // pred_check_branch
      %13 = sbr.rel (0) target = $region9
    $region8: #{tpu_custom_call.1} parent=1 // pred_region
      _
    $region9: #{tpu_custom_call.1} parent=1 // pred_fallthru
      _
    // Predicated region
    $region10: #{tpu_custom_call.1} parent=1 // pred_check
      _
    $region11: #{tpu_custom_call.1} parent=1 // pred_check_branch
      %15 = sbr.rel (0) target = $region13
    $region12: #{tpu_custom_call.1} parent=1 // pred_region
      _
    $region13: #{tpu_custom_call.1} parent=1 // pred_fallthru
      _
    // Predicated region
    $region14: #{tpu_custom_call.1} parent=1 // pred_check
      _
    $region15: #{tpu_custom_call.1} parent=1 // pred_check_branch
      %17 = sbr.rel (0) target = $region17
    $region16: #{tpu_custom_call.1} parent=1 // pred_region
      _
    $region17: #{tpu_custom_call.1} parent=1 // pred_fallthru
      _
    %v19 = vld [vmem:[%s0] sm:$0x7]
    %v20 = vld [vmem:[%s1] sm:$0xff]
    %v21 = vld [vmem:[%s1 + $0x8] sm:$0xff]
    %v22 = vld [vmem:[%s1 + $0x10] sm:$0xff]
    %v23 = vld [vmem:[%s1 + $0x18] sm:$0xff]
    %v24 = vld [vmem:[%s1 + $0x20] sm:$0xff]
    %v25 = vld [vmem:[%s1 + $0x28] sm:$0xff]
    %v26 = vld [vmem:[%s1 + $0x30] sm:$0xff]
    %v27 = vld [vmem:[%s1 + $0x38] sm:$0xff]
    %v28 = vld [vmem:[%s3] sm:$0xff]
    %v29 = vld [vmem:[%s3 + $0x8] sm:$0xff]
    %v30 = vld [vmem:[%s3 + $0x10] sm:$0xff]
    %v31 = vld [vmem:[%s3 + $0x18] sm:$0xff]
    %v32 = vld [vmem:[%s3 + $0x20] sm:$0xff]
    %v33 = vld [vmem:[%s3 + $0x28] sm:$0xff]
    %v34 = vld [vmem:[%s3 + $0x30] sm:$0xff]
    %v35 = vld [vmem:[%s3 + $0x38] sm:$0xff]
    %v36 = vld [vmem:[%s3] sm:$0x1]
    %38 = vset.pattern.permute.xlu0 0
    %39 = vperm.xlu0 %38, %v20
    %v40 = vpop.permute.xlu0 %39
    %43 = vset.pattern.permute.xlu0 0
    %44 = vperm.xlu0 %43, %v21
    %v45 = vpop.permute.xlu0 %44
    %48 = vset.pattern.permute.xlu0 0
    %49 = vperm.xlu0 %48, %v22
    %v50 = vpop.permute.xlu0 %49
    %53 = vset.pattern.permute.xlu0 0
    %54 = vperm.xlu0 %53, %v23
    %v55 = vpop.permute.xlu0 %54
    %58 = vset.pattern.permute.xlu0 0
    %59 = vperm.xlu0 %58, %v24
    %v60 = vpop.permute.xlu0 %59
    %63 = vset.pattern.permute.xlu0 0
    %64 = vperm.xlu0 %63, %v25
    %v65 = vpop.permute.xlu0 %64
    %68 = vset.pattern.permute.xlu0 0
    %69 = vperm.xlu0 %68, %v26
    %v70 = vpop.permute.xlu0 %69
    %73 = vset.pattern.permute.xlu0 0
    %74 = vperm.xlu0 %73, %v27
    %v75 = vpop.permute.xlu0 %74
    %v77 = vlaneseq
    %v78 = vshrl.u32 %v77, 7
    %v79 = vsub.s32 0, %v78
    %v80 = vrot.slane %v19, %v79
    %v81 = vmul.f32 %v40, %v80
    %v82 = vmul.f32 %v45, %v80
    %v83 = vmul.f32 %v50, %v80
    %v84 = vmul.f32 %v55, %v80
    %v85 = vmul.f32 %v60, %v80
    %v86 = vmul.f32 %v65, %v80
    %v87 = vmul.f32 %v70, %v80
    %v88 = vmul.f32 %v75, %v80
    %89 = vset.pattern.permute.xlu0 1
    %90 = vperm.xlu0 %89, %v20
    %v91 = vpop.permute.xlu0 %90
    %93 = vset.pattern.permute.xlu0 1
    %94 = vperm.xlu0 %93, %v21
    %v95 = vpop.permute.xlu0 %94
    %97 = vset.pattern.permute.xlu0 1
    %98 = vperm.xlu0 %97, %v22
    %v99 = vpop.permute.xlu0 %98
    %101 = vset.pattern.permute.xlu0 1
    %102 = vperm.xlu0 %101, %v23
    %v103 = vpop.permute.xlu0 %102
    %105 = vset.pattern.permute.xlu0 1
    %106 = vperm.xlu0 %105, %v24
    %v107 = vpop.permute.xlu0 %106
    %109 = vset.pattern.permute.xlu0 1
    %110 = vperm.xlu0 %109, %v25
    %v111 = vpop.permute.xlu0 %110
    %113 = vset.pattern.permute.xlu0 1
    %114 = vperm.xlu0 %113, %v26
    %v115 = vpop.permute.xlu0 %114
    %117 = vset.pattern.permute.xlu0 1
    %118 = vperm.xlu0 %117, %v27
    %v119 = vpop.permute.xlu0 %118
    %v121 = vlaneseq
    %v122 = vshrl.u32 %v121, 7
    %v123 = vsub.s32 1, %v122
    %v124 = vrot.slane %v19, %v123
    %v125 = vmul.f32 %v91, %v124
    %v126 = vmul.f32 %v95, %v124
    %v127 = vmul.f32 %v99, %v124
    %v128 = vmul.f32 %v103, %v124
    %v129 = vmul.f32 %v107, %v124
    %v130 = vmul.f32 %v111, %v124
    %v131 = vmul.f32 %v115, %v124
    %v132 = vmul.f32 %v119, %v124
    %v133 = vadd.f32 %v81, %v125
    %v134 = vadd.f32 %v82, %v126
    %v135 = vadd.f32 %v83, %v127
    %v136 = vadd.f32 %v84, %v128
    %v137 = vadd.f32 %v85, %v129
    %v138 = vadd.f32 %v86, %v130
    %v139 = vadd.f32 %v87, %v131
    %v140 = vadd.f32 %v88, %v132
    %141 = vset.pattern.permute.xlu0 2
    %142 = vperm.xlu0 %141, %v20
    %v143 = vpop.permute.xlu0 %142
    %145 = vset.pattern.permute.xlu0 2
    %146 = vperm.xlu0 %145, %v21
    %v147 = vpop.permute.xlu0 %146
    %149 = vset.pattern.permute.xlu0 2
    %150 = vperm.xlu0 %149, %v22
    %v151 = vpop.permute.xlu0 %150
    %153 = vset.pattern.permute.xlu0 2
    %154 = vperm.xlu0 %153, %v23
    %v155 = vpop.permute.xlu0 %154
    %157 = vset.pattern.permute.xlu0 2
    %158 = vperm.xlu0 %157, %v24
    %v159 = vpop.permute.xlu0 %158
    %161 = vset.pattern.permute.xlu0 2
    %162 = vperm.xlu0 %161, %v25
    %v163 = vpop.permute.xlu0 %162
    %165 = vset.pattern.permute.xlu0 2
    %166 = vperm.xlu0 %165, %v26
    %v167 = vpop.permute.xlu0 %166
    %169 = vset.pattern.permute.xlu0 2
    %170 = vperm.xlu0 %169, %v27
    %v171 = vpop.permute.xlu0 %170
    %v173 = vlaneseq
    %v174 = vshrl.u32 %v173, 7
    %v175 = vsub.s32 2, %v174
    %v176 = vrot.slane %v19, %v175
    %v177 = vmul.f32 %v143, %v176
    %v178 = vmul.f32 %v147, %v176
    %v179 = vmul.f32 %v151, %v176
    %v180 = vmul.f32 %v155, %v176
    %v181 = vmul.f32 %v159, %v176
    %v182 = vmul.f32 %v163, %v176
    %v183 = vmul.f32 %v167, %v176
    %v184 = vmul.f32 %v171, %v176
    %v185 = vadd.f32 %v133, %v177
    %v186 = vadd.f32 %v134, %v178
    %v187 = vadd.f32 %v135, %v179
    %v188 = vadd.f32 %v136, %v180
    %v189 = vadd.f32 %v137, %v181
    %v190 = vadd.f32 %v138, %v182
    %v191 = vadd.f32 %v139, %v183
    %v192 = vadd.f32 %v140, %v184
    %194 = vset.pattern.permute.xlu0 0
    %195 = vperm.xlu0 %194, %v28
    %v196 = vpop.permute.xlu0 %195
    %199 = vset.pattern.permute.xlu0 0
    %200 = vperm.xlu0 %199, %v29
    %v201 = vpop.permute.xlu0 %200
    %204 = vset.pattern.permute.xlu0 0
    %205 = vperm.xlu0 %204, %v30
    %v206 = vpop.permute.xlu0 %205
    %209 = vset.pattern.permute.xlu0 0
    %210 = vperm.xlu0 %209, %v31
    %v211 = vpop.permute.xlu0 %210
    %214 = vset.pattern.permute.xlu0 0
    %215 = vperm.xlu0 %214, %v32
    %v216 = vpop.permute.xlu0 %215
    %219 = vset.pattern.permute.xlu0 0
    %220 = vperm.xlu0 %219, %v33
    %v221 = vpop.permute.xlu0 %220
    %224 = vset.pattern.permute.xlu0 0
    %225 = vperm.xlu0 %224, %v34
    %v226 = vpop.permute.xlu0 %225
    %229 = vset.pattern.permute.xlu0 0
    %230 = vperm.xlu0 %229, %v35
    %v231 = vpop.permute.xlu0 %230
    %v233 = vadd.f32 %v185, %v196
    %v234 = vadd.f32 %v186, %v201
    %v235 = vadd.f32 %v187, %v206
    %v236 = vadd.f32 %v188, %v211
    %v237 = vadd.f32 %v189, %v216
    %v238 = vadd.f32 %v190, %v221
    %v239 = vadd.f32 %v191, %v226
    %v240 = vadd.f32 %v192, %v231
    %v241 = vmax.f32 %v233, 0.0
    %v242 = vmax.f32 %v234, 0.0
    %v243 = vmax.f32 %v235, 0.0
    %v244 = vmax.f32 %v236, 0.0
    %v245 = vmax.f32 %v237, 0.0
    %v246 = vmax.f32 %v238, 0.0
    %v247 = vmax.f32 %v239, 0.0
    %v248 = vmax.f32 %v240, 0.0
    %v249 = vld [vmem:[%s2] sm:$0xf]
    %v250 = vld [vmem:[%s2 + $0x4] sm:$0xf]
    %v251 = vld [vmem:[%s2 + $0x8] sm:$0xf]
    %v252 = vld [vmem:[%s2 + $0xc] sm:$0xf]
    %v253 = vld [vmem:[%s2 + $0x10] sm:$0xf]
    %v254 = vld [vmem:[%s2 + $0x14] sm:$0xf]
    %v255 = vld [vmem:[%s2 + $0x18] sm:$0xf]
    %v256 = vld [vmem:[%s2 + $0x1c] sm:$0xf]
    %v257 = vpack.c.bf16 %v242, %v241
    %v258 = vpack.c.bf16 %v244, %v243
    %v259 = vpack.c.bf16 %v246, %v245
    %v260 = vpack.c.bf16 %v248, %v247
    %261 = vset.pattern.permute.xlu0 1
    %262 = vperm.xlu0 %261, %v28
    %v263 = vpop.permute.xlu0 %262
    %265 = vset.pattern.permute.xlu0 1
    %266 = vperm.xlu0 %265, %v29
    %v267 = vpop.permute.xlu0 %266
    %269 = vset.pattern.permute.xlu0 1
    %270 = vperm.xlu0 %269, %v30
    %v271 = vpop.permute.xlu0 %270
    %273 = vset.pattern.permute.xlu0 1
    %274 = vperm.xlu0 %273, %v31
    %v275 = vpop.permute.xlu0 %274
    %277 = vset.pattern.permute.xlu0 1
    %278 = vperm.xlu0 %277, %v32
    %v279 = vpop.permute.xlu0 %278
    %281 = vset.pattern.permute.xlu0 1
    %282 = vperm.xlu0 %281, %v33
    %v283 = vpop.permute.xlu0 %282
    %285 = vset.pattern.permute.xlu0 1
    %286 = vperm.xlu0 %285, %v34
    %v287 = vpop.permute.xlu0 %286
    %289 = vset.pattern.permute.xlu0 1
    %290 = vperm.xlu0 %289, %v35
    %v291 = vpop.permute.xlu0 %290
    %v301 = vunpack.c.l.b16 %v249
    %v302 = vunpack.c.l.b16 %v250
    %v303 = vunpack.c.l.b16 %v251
    %v304 = vunpack.c.l.b16 %v252
    %v305 = vunpack.c.l.b16 %v253
    %v306 = vunpack.c.l.b16 %v254
    %v307 = vunpack.c.l.b16 %v255
    %v308 = vunpack.c.l.b16 %v256
    %v309 = vpack.c.b16 %v302, %v301
    %v310 = vpack.c.b16 %v304, %v303
    %v311 = vpack.c.b16 %v306, %v305
    %v312 = vpack.c.b16 %v308, %v307
    %vm313 = vcmask 523264
    %v315 = vsel %vm313, %v309, 0
    %v318 = vsel %vm313, %v310, 0
    %v321 = vsel %vm313, %v311, 0
    %v324 = vsel %vm313, %v312, 0
    %326 = vmatprep.subr.bf16.mxu0 0
    %327 = vmatpush1.bf16.msra.mxu0 %v257
    %328 = vmatprep.subr.bf16.mxu0 0
    %329 = vmatpush1.bf16.msra.mxu0 %v258
    %330 = vmatprep.subr.bf16.mxu0 0
    %331 = vmatpush1.bf16.msra.mxu0 %v259
    %332 = vmatprep.subr.bf16.mxu0 0
    %333 = vmatpush1.bf16.msra.mxu0 %v260
    %334 = vmatprep.subr.bf16.mxu0 0
    %335 = vmatpush1.bf16.msra.mxu0 0
    %336 = vmatprep.subr.bf16.mxu0 0
    %337 = vmatpush1.bf16.msra.mxu0 0
    %338 = vmatprep.subr.bf16.mxu0 0
    %339 = vmatpush1.bf16.msra.mxu0 0
    %340 = vmatprep.subr.bf16.mxu0 0
    %341 = vmatpush1.bf16.msra.mxu0 0
    %342 = vmatprep.subr.bf16.mxu0 0
    %343 = vmatpush1.bf16.msra.mxu0 0
    %344 = vmatprep.subr.bf16.mxu0 0
    %345 = vmatpush1.bf16.msra.mxu0 0
    %346 = vmatprep.subr.bf16.mxu0 0
    %347 = vmatpush1.bf16.msra.mxu0 0
    %348 = vmatprep.subr.bf16.mxu0 0
    %349 = vmatpush1.bf16.msra.mxu0 0
    %350 = vmatprep.subr.bf16.mxu0 0
    %351 = vmatpush1.bf16.msra.mxu0 0
    %352 = vmatprep.subr.bf16.mxu0 0
    %353 = vmatpush1.bf16.msra.mxu0 0
    %354 = vmatprep.subr.bf16.mxu0 0
    %355 = vmatpush1.bf16.msra.mxu0 0
    %356 = vmatprep.subr.bf16.mxu0 0
    %357 = vmatpush1.bf16.msra.mxu0 0
    %358 = vmatprep.mubr.bf16.mxu0 0
    %359 = vmatmul.mubr.bf16.gmra.mrb[0].mxu0 %v315
    %v360 = vpop.f32.mrb[0].mxu0
    %v361 = vadd.f32 %v263, %v360
    %v362 = vpop.f32.mrb[0].mxu0
    %v363 = vpop.f32.mrb[0].mxu0
    %v364 = vadd.f32 %v267, %v363
    %v365 = vpop.f32.mrb[0].mxu0
    %366 = vmatprep.mubr.bf16.mxu0 0
    %367 = vmatmul.mubr.bf16.gmra.mrb[0].mxu0 %v318
    %v368 = vpop.f32.mrb[0].mxu0
    %v369 = vadd.f32 %v271, %v368
    %v370 = vpop.f32.mrb[0].mxu0
    %v371 = vpop.f32.mrb[0].mxu0
    %v372 = vadd.f32 %v275, %v371
    %v373 = vpop.f32.mrb[0].mxu0
    %374 = vmatprep.mubr.bf16.mxu0 0
    %375 = vmatmul.mubr.bf16.gmra.mrb[0].mxu0 %v321
    %v376 = vpop.f32.mrb[0].mxu0
    %v377 = vadd.f32 %v279, %v376
    %v378 = vpop.f32.mrb[0].mxu0
    %v379 = vpop.f32.mrb[0].mxu0
    %v380 = vadd.f32 %v283, %v379
    %v381 = vpop.f32.mrb[0].mxu0
    %382 = vmatprep.mubr.bf16.mxu0 0
    %383 = vmatmul.mubr.bf16.gmra.mrb[0].mxu0 %v324
    %v384 = vpop.f32.mrb[0].mxu0
    %v385 = vadd.f32 %v287, %v384
    %v386 = vpop.f32.mrb[0].mxu0
    %v387 = vpop.f32.mrb[0].mxu0
    %v388 = vadd.f32 %v291, %v387
    %v389 = vpop.f32.mrb[0].mxu0
    %390 = vdwg.mxu0
    %v391 = vmax.f32 %v361, 0.0
    %v392 = vmax.f32 %v364, 0.0
    %v393 = vmax.f32 %v369, 0.0
    %v394 = vmax.f32 %v372, 0.0
    %v395 = vmax.f32 %v377, 0.0
    %v396 = vmax.f32 %v380, 0.0
    %v397 = vmax.f32 %v385, 0.0
    %v398 = vmax.f32 %v388, 0.0
    %399 = vset.pattern.permute.xlu0 2
    %400 = vperm.xlu0 %399, %v28
    %v401 = vpop.permute.xlu0 %400
    %403 = vset.pattern.permute.xlu0 2
    %404 = vperm.xlu0 %403, %v29
    %v405 = vpop.permute.xlu0 %404
    %407 = vset.pattern.permute.xlu0 2
    %408 = vperm.xlu0 %407, %v30
    %v409 = vpop.permute.xlu0 %408
    %411 = vset.pattern.permute.xlu0 2
    %412 = vperm.xlu0 %411, %v31
    %v413 = vpop.permute.xlu0 %412
    %415 = vset.pattern.permute.xlu0 2
    %416 = vperm.xlu0 %415, %v32
    %v417 = vpop.permute.xlu0 %416
    %419 = vset.pattern.permute.xlu0 2
    %420 = vperm.xlu0 %419, %v33
    %v421 = vpop.permute.xlu0 %420
    %423 = vset.pattern.permute.xlu0 2
    %424 = vperm.xlu0 %423, %v34
    %v425 = vpop.permute.xlu0 %424
    %427 = vset.pattern.permute.xlu0 2
    %428 = vperm.xlu0 %427, %v35
    %v429 = vpop.permute.xlu0 %428
    %v431 = vmul.f32 %v391, %v401
    %v432 = vmul.f32 %v392, %v405
    %v433 = vmul.f32 %v393, %v409
    %v434 = vmul.f32 %v394, %v413
    %v435 = vmul.f32 %v395, %v417
    %v436 = vmul.f32 %v396, %v421
    %v437 = vmul.f32 %v397, %v425
    %v438 = vmul.f32 %v398, %v429
    %v439 = vadd.f32 %v431, %v432
    %v440 = vadd.f32 %v439, %v433
    %v441 = vadd.f32 %v440, %v434
    %v442 = vadd.f32 %v441, %v435
    %v443 = vadd.f32 %v442, %v436
    %v444 = vadd.f32 %v443, %v437
    %v445 = vadd.f32 %v444, %v438
    %v446 = vrot.slane %v445, 4
    %v447 = vadd.f32 %v445, %v446
    %v448 = vrot.slane %v447, 2
    %v449 = vadd.f32 %v447, %v448
    %v450 = vrot.slane %v449, 1
    %v451 = vadd.f32 %v449, %v450
    %453 = vset.pattern.permute.xlu0 3
    %454 = vperm.xlu0 %453, %v36
    %v455 = vpop.permute.xlu0 %454
    %v457 = vadd.f32 %v451, %v455
    %458 = vst [vmem:[#allocation2] sm:$0x1] %v457
    // Predicated region
    $region18: #{tpu_custom_call.1} parent=1 // pred_check
      _
    $region19: #{tpu_custom_call.1} parent=1 // pred_check_branch
      %460 = sbr.rel (0) target = $region21
    $region20: #{tpu_custom_call.1} parent=1 // pred_region
      %s462 = ssub.s32 16, 16
      %463 = vsyncadd [#allocation3], %s462
      %s465 = sshll.u32 [#allocation2], 4
      %s466 = int_to_ptr.vmem [resolvable:$true] %s465
      %468 = dma.vmem_to_hbm [thread:$0]  %s466, 16, %s4, [#allocation3]
    $region21: #{tpu_custom_call.1} parent=1 // pred_fallthru
      _
    // Predicated region
    $region22: #{tpu_custom_call.1} parent=1 // pred_check
      _
    $region23: #{tpu_custom_call.1} parent=1 // pred_check_branch
      %470 = sbr.rel (0) target = $region25
    $region24: #{tpu_custom_call.1} parent=1 // pred_region
      %471 = dma.done [#allocation3], 16
    $region25: #{tpu_custom_call.1} parent=1 // pred_fallthru
      _
    %472 = vsyncpa [#allocation3], 1

</llo_original>
